<compile_context>
chip_gen: v7x
topology: tpu7x:2x2x1
jax: 0.10.0
libtpu: 0.0.40
codegen_flags: <defaults>
</compile_context>

<pallas_src>
import functools

import jax
import jax.numpy as jnp
from jax import lax
from jax.experimental import pallas as pl
from jax.experimental.pallas import tpu as pltpu


def _round_up(x, m):
    return ((x + m - 1) // m) * m


# ----------------------------------------------------------------------------
# Kernel
# ----------------------------------------------------------------------------
def _prenorm_linear_kernel(x_ref, w_ref, b_ref, o_ref, *, eps):
    # x_ref: (TM, D)   row tile of the flattened activation (true feature width)
    # w_ref: (D, Dp)   Linear weight with the RMSNorm scale pre-folded in
    #                  (output axis lane-padded to a multiple of 128)
    # b_ref: (1, Dp)   Linear bias (zero-padded on the output axis)
    x = x_ref[...]

    # MXU: operands in their native dtype, f32 accumulation.  Started
    # independently of the normalization reduction below.
    xw = jnp.dot(x, w_ref[...], preferred_element_type=jnp.float32)

    # RMSNorm statistics in f32 on the VPU/XLU/EUP slots.  mean() divides by
    # the true feature count (x is never feature-padded).
    xf = x.astype(jnp.float32)
    inv = lax.rsqrt(jnp.mean(xf * xf, axis=-1, keepdims=True) + eps)

    # Per-row scalar commutes with the matmul: (x * inv) @ W == (x @ W) * inv.
    y = xw * inv + b_ref[...].astype(jnp.float32)
    o_ref[...] = y.astype(o_ref.dtype)


# ----------------------------------------------------------------------------
# Tile / VMEM budgeting (generation-aware)
# ----------------------------------------------------------------------------
def _vmem_capacity_bytes():
    try:
        info = pltpu.get_tpu_info()
        cap = int(getattr(info, "vmem_capacity_bytes", 0) or 0)
        if cap > 0:
            return cap
    except Exception:
        pass
    return 64 << 20  # conservative fallback (v7x per-TensorCore VMEM)


def _choose_tm(rows, d_in, d_out_p, x_dtype, out_dtype, param_bytes):
    in_item = jnp.dtype(x_dtype).itemsize
    out_item = jnp.dtype(out_dtype).itemsize
    gran = max(8, 32 // max(1, in_item))          # 8 f32 / 16 bf16 / 32 int8

    cap = _vmem_capacity_bytes()
    budget = int(cap * 0.70)                      # headroom for compiler scratch
    # Resident weight + bias; count both buffers in case Buffered(1) falls back.
    avail = budget - 2 * param_bytes

    # Per row: double-buffered x tile + out tile, plus in-kernel f32 temporaries
    # (matmul accumulator, f32 copy of x, final y) — conservative.
    per_row = (2 * d_in * in_item
               + 2 * d_out_p * out_item
               + 4 * (2 * d_out_p + d_in))

    tm = avail // per_row if avail > 0 else gran
    tm = max(gran, min(1024, (tm // gran) * gran))
    tm = min(tm, _round_up(rows, gran))           # don't over-tile tiny inputs
    return int(tm), int(min(cap * 3 // 4, max(budget, 32 << 20)))


# ----------------------------------------------------------------------------
# One-time parameter prep (hoisted out of the per-call path)
# ----------------------------------------------------------------------------
def prepare_prenorm_linear_params(scale, w, b):
    """Fold the RMSNorm scale into W and lane-pad the OUTPUT axis of W/b.

    (x * inv * scale) @ W == (x * inv) @ (diag(scale) @ W)   (exact identity).
    Padding is conditional: for 128-aligned output dims it is a no-op.
    """
    d_in, d_out = w.shape
    w_folded = (scale.astype(jnp.float32)[:, None]
                * w.astype(jnp.float32)).astype(w.dtype)
    d_out_p = max(128, _round_up(d_out, 128))
    b2d = b.reshape(1, d_out)
    if d_out_p != d_out:
        w_folded = jnp.pad(w_folded, ((0, 0), (0, d_out_p - d_out)))
        b2d = jnp.pad(b2d, ((0, 0), (0, d_out_p - d_out)))
    return w_folded, b2d, d_out


# ----------------------------------------------------------------------------
# Forward
# ----------------------------------------------------------------------------
def prenorm_linear_apply(x, w_p, b_p, d_out, *, eps=1e-6):
    """PreNorm(dim, Linear(dim, dim)) forward.

    x:    (B, N, D)                activation
    w_p:  (D, Dp)  from prepare_prenorm_linear_params  (scale folded, padded)
    b_p:  (1, Dp)                  padded bias
    d_out: true output feature count
    """
    B, N, D = x.shape
    R = B * N
    Dp = w_p.shape[1]

    x2d = x.reshape(R, D)                          # free reshape; no HBM copy

    param_bytes = (w_p.size * jnp.dtype(w_p.dtype).itemsize
                   + b_p.size * jnp.dtype(b_p.dtype).itemsize)
    tm, vmem_limit = _choose_tm(R, D, Dp, x.dtype, x.dtype, param_bytes)

    def build(single_buffer_params):
        if single_buffer_params:
            w_spec = pl.BlockSpec((D, Dp), lambda i: (0, 0),
                                  pipeline_mode=pl.Buffered(1))
            b_spec = pl.BlockSpec((1, Dp), lambda i: (0, 0),
                                  pipeline_mode=pl.Buffered(1))
        else:
            w_spec = pl.BlockSpec((D, Dp), lambda i: (0, 0))
            b_spec = pl.BlockSpec((1, Dp), lambda i: (0, 0))
        return pl.pallas_call(
            functools.partial(_prenorm_linear_kernel, eps=eps),
            out_shape=jax.ShapeDtypeStruct((R, Dp), x.dtype),
            grid_spec=pltpu.PrefetchScalarGridSpec(
                num_scalar_prefetch=0,
                grid=(pl.cdiv(R, tm),),            # ragged last tile handled by Pallas
                in_specs=[
                    pl.BlockSpec((tm, D), lambda i: (i, 0)),   # streamed x rows
                    w_spec,                                     # resident weight
                    b_spec,                                     # resident bias
                ],
                out_specs=pl.BlockSpec((tm, Dp), lambda i: (i, 0)),
            ),
            compiler_params=pltpu.CompilerParams(
                dimension_semantics=("parallel",),  # rows independent → megacore
                vmem_limit_bytes=vmem_limit,
            ),
        )

    # Prefer single-buffered resident params (halves weight VMEM on v7x);
    # fall back to default double-buffering if this JAX build rejects it.
    try:
        out2d = build(True)(x2d, w_p, b_p)
    except Exception:
        out2d = build(False)(x2d, w_p, b_p)

    if Dp != d_out:                                 # no-op for 128-aligned dims
        out2d = out2d[:, :d_out]
    return out2d.reshape(B, N, d_out)


def prenorm_linear_ref(x, scale, w, b, *, eps=1e-6):
    """Pure-JAX reference matching the PyTorch forward (f32 math)."""
    xf = x.astype(jnp.float32)
    normed = xf * lax.rsqrt(
        jnp.mean(xf * xf, axis=-1, keepdims=True) + eps) * scale.astype(jnp.float32)
    y = normed @ w.astype(jnp.float32) + b.astype(jnp.float32)
    return y.astype(x.dtype)


if __name__ == "__main__":
    B, N, D = 2, 8, 32  # batch=2, seq=8, dim=32

    key = jax.random.PRNGKey(0)
    kx, kw, kb = jax.random.split(key, 3)

    x = jax.random.normal(kx, (B, N, D), dtype=jnp.float32)
    scale = jnp.ones((D,), dtype=jnp.float32)      # RMSNorm scale init (PyTorch)
    w = jax.random.normal(kw, (D, D), dtype=jnp.float32) * 0.05
    b = jax.random.normal(kb, (D,), dtype=jnp.float32) * 0.01

    # f32 path
    w_p, b_p, d_out = prepare_prenorm_linear_params(scale, w, b)
    out = prenorm_linear_apply(x, w_p, b_p, d_out)
    jax.block_until_ready(out)
    ref = prenorm_linear_ref(x, scale, w, b)
    assert out.shape == (B, N, D)
    assert jnp.allclose(out, ref, atol=1e-5, rtol=1e-5), "f32 mismatch vs reference"

    # bf16 path (MXU-native operands, f32 accumulation) — looser tolerance.
    # Note: folding scale into a bf16 weight re-rounds scale*W to bf16 (slightly
    # different rounding than PyTorch's separate ops; within bf16 tolerance).
    xb = x.astype(jnp.bfloat16)
    wb = w.astype(jnp.bfloat16)
    bb = b.astype(jnp.bfloat16)
    sb = scale.astype(jnp.bfloat16)
    w_pb, b_pb, d_out_b = prepare_prenorm_linear_params(sb, wb, bb)
    out_bf = prenorm_linear_apply(xb, w_pb, b_pb, d_out_b)
    jax.block_until_ready(out_bf)
    ref_bf = prenorm_linear_ref(xb, sb, wb, bb)
    assert jnp.allclose(out_bf.astype(jnp.float32), ref_bf.astype(jnp.float32),
                        atol=3e-2, rtol=3e-2), "bf16 mismatch vs reference"

    print("KERNEL_OK")
</pallas_src>

<mosaic_0001>
module attributes {stable_mosaic.version = 11 : i64} {
  func.func @_prenorm_linear_kernel(%arg0: i32, %arg1: memref<16x32xf32, #tpu.memory_space<vmem>>, %arg2: memref<32x128xf32, #tpu.memory_space<vmem>>, %arg3: memref<1x128xf32, #tpu.memory_space<vmem>>, %arg4: memref<16x128xf32, #tpu.memory_space<vmem>>) attributes {dimension_semantics = [#tpu.dimension_semantics<parallel>], iteration_bounds = array<i64: 1>, scalar_prefetch = 0 : i64, scratch_operands = 0 : i64, tpu.core_type = #tpu.core_type<tc>, window_params = [{transform_indices = @transform_0, window_bounds = array<i64: 16, 32>}, {pipeline_mode = #tpu.pipeline_mode<synchronous>, transform_indices = @transform_1, window_bounds = array<i64: 32, 128>}, {pipeline_mode = #tpu.pipeline_mode<synchronous>, transform_indices = @transform_2, window_bounds = array<i64: 1, 128>}, {transform_indices = @transform_3, window_bounds = array<i64: 16, 128>}]} {
    %c0 = arith.constant 0 : index
    %c0_0 = arith.constant 0 : index
    %0 = vector.load %arg1[%c0, %c0_0] : memref<16x32xf32, #tpu.memory_space<vmem>>, vector<16x32xf32>
    %c0_1 = arith.constant 0 : index
    %c0_2 = arith.constant 0 : index
    %1 = vector.load %arg2[%c0_1, %c0_2] : memref<32x128xf32, #tpu.memory_space<vmem>>, vector<32x128xf32>
    %cst = arith.constant dense<0.000000e+00> : vector<16x128xf32>
    %2 = tpu.matmul %0, %1, %cst {dimension_numbers = #tpu.dot_dimension_numbers<[1], [0], [0], [1], [0, 0, 1, 1], [], []>} : vector<16x32xf32>, vector<32x128xf32>, vector<16x128xf32> -> vector<16x128xf32>
    %3 = arith.mulf %0, %0 : vector<16x32xf32>
    %cst_3 = arith.constant dense<0.000000e+00> : vector<16xf32>
    %4 = vector.multi_reduction <add>, %3, %cst_3 [1] : vector<16x32xf32> to vector<16xf32>
    %5 = vector.shape_cast %4 : vector<16xf32> to vector<16x1xf32>
    %cst_4 = arith.constant 3.200000e+01 : f32
    %6 = vector.broadcast %cst_4 : f32 to vector<16x1xf32>
    %7 = arith.divf %5, %6 : vector<16x1xf32>
    %cst_5 = arith.constant 9.99999997E-7 : f32
    %8 = vector.broadcast %cst_5 : f32 to vector<16x1xf32>
    %9 = arith.addf %7, %8 : vector<16x1xf32>
    %10 = math.rsqrt %9 : vector<16x1xf32>
    %11 = vector.broadcast %10 : vector<16x1xf32> to vector<16x128xf32>
    %12 = arith.mulf %2, %11 : vector<16x128xf32>
    %c0_6 = arith.constant 0 : index
    %c0_7 = arith.constant 0 : index
    %13 = vector.load %arg3[%c0_6, %c0_7] : memref<1x128xf32, #tpu.memory_space<vmem>>, vector<1x128xf32>
    %14 = vector.broadcast %13 : vector<1x128xf32> to vector<16x128xf32>
    %15 = arith.addf %12, %14 : vector<16x128xf32>
    %c0_8 = arith.constant 0 : index
    %c0_9 = arith.constant 0 : index
    %16 = vector.load %arg4[%c0_8, %c0_9] : memref<16x128xf32, #tpu.memory_space<vmem>>, vector<16x128xf32>
    tpu.vector_store %arg4[%c0_8, %c0_9], %15 {strides = array<i32>} : memref<16x128xf32, #tpu.memory_space<vmem>>, vector<16x128xf32>,
    return
  }
  func.func @transform_0(%arg0: i32) -> (i32, i32) {
    %c0_i32 = arith.constant 0 : i32
    %c0_i32_0 = arith.constant 0 : i32
    return %arg0, %c0_i32 : i32, i32
  }
  func.func @transform_1(%arg0: i32) -> (i32, i32) {
    %c0_i32 = arith.constant 0 : i32
    %c0_i32_0 = arith.constant 0 : i32
    %c0_i32_1 = arith.constant 0 : i32
    return %c0_i32, %c0_i32_0 : i32, i32
  }
  func.func @transform_2(%arg0: i32) -> (i32, i32) {
    %c0_i32 = arith.constant 0 : i32
    %c0_i32_0 = arith.constant 0 : i32
    %c0_i32_1 = arith.constant 0 : i32
    return %c0_i32, %c0_i32_0 : i32, i32
  }
  func.func @transform_3(%arg0: i32) -> (i32, i32) {
    %c0_i32 = arith.constant 0 : i32
    %c0_i32_0 = arith.constant 0 : i32
    return %arg0, %c0_i32 : i32, i32
  }
}

module attributes {stable_mosaic.version = 11 : i64} {
  func.func @_prenorm_linear_kernel(%arg0: i32, %arg1: memref<16x32xf32, #tpu.memory_space<vmem>>, %arg2: memref<32x128xf32, #tpu.memory_space<vmem>>, %arg3: memref<1x128xf32, #tpu.memory_space<vmem>>, %arg4: memref<16x128xf32, #tpu.memory_space<vmem>>) attributes {dimension_semantics = [#tpu.dimension_semantics<parallel>], iteration_bounds = array<i64: 1>, scalar_prefetch = 0 : i64, scratch_operands = 0 : i64, tpu.core_type = #tpu.core_type<tc>, window_params = [{transform_indices = @transform_0, window_bounds = array<i64: 16, 32>}, {pipeline_mode = #tpu.pipeline_mode<synchronous>, transform_indices = @transform_1, window_bounds = array<i64: 32, 128>}, {pipeline_mode = #tpu.pipeline_mode<synchronous>, transform_indices = @transform_2, window_bounds = array<i64: 1, 128>}, {transform_indices = @transform_3, window_bounds = array<i64: 16, 128>}]} {
    %c0 = arith.constant 0 : index
    %c0_0 = arith.constant 0 : index
    %0 = vector.load %arg1[%c0, %c0_0] : memref<16x32xf32, #tpu.memory_space<vmem>>, vector<16x32xf32>
    %c0_1 = arith.constant 0 : index
    %c0_2 = arith.constant 0 : index
    %1 = vector.load %arg2[%c0_1, %c0_2] : memref<32x128xf32, #tpu.memory_space<vmem>>, vector<32x128xf32>
    %cst = arith.constant dense<0.000000e+00> : vector<16x128xf32>
    %2 = tpu.matmul %0, %1, %cst {dimension_numbers = #tpu.dot_dimension_numbers<[1], [0], [0], [1], [0, 0, 1, 1], [], []>} : vector<16x32xf32>, vector<32x128xf32>, vector<16x128xf32> -> vector<16x128xf32>
    %3 = arith.mulf %0, %0 : vector<16x32xf32>
    %cst_3 = arith.constant dense<0.000000e+00> : vector<16xf32>
    %4 = vector.multi_reduction <add>, %3, %cst_3 [1] : vector<16x32xf32> to vector<16xf32>
    %5 = vector.shape_cast %4 : vector<16xf32> to vector<16x1xf32>
    %cst_4 = arith.constant 3.200000e+01 : f32
    %6 = vector.broadcast %cst_4 : f32 to vector<16x1xf32>
    %7 = arith.divf %5, %6 : vector<16x1xf32>
    %cst_5 = arith.constant 9.99999997E-7 : f32
    %8 = vector.broadcast %cst_5 : f32 to vector<16x1xf32>
    %9 = arith.addf %7, %8 : vector<16x1xf32>
    %10 = math.rsqrt %9 : vector<16x1xf32>
    %11 = vector.broadcast %10 : vector<16x1xf32> to vector<16x128xf32>
    %12 = arith.mulf %2, %11 : vector<16x128xf32>
    %c0_6 = arith.constant 0 : index
    %c0_7 = arith.constant 0 : index
    %13 = vector.load %arg3[%c0_6, %c0_7] : memref<1x128xf32, #tpu.memory_space<vmem>>, vector<1x128xf32>
    %14 = vector.broadcast %13 : vector<1x128xf32> to vector<16x128xf32>
    %15 = arith.addf %12, %14 : vector<16x128xf32>
    %c0_8 = arith.constant 0 : index
    %c0_9 = arith.constant 0 : index
    %16 = vector.load %arg4[%c0_8, %c0_9] : memref<16x128xf32, #tpu.memory_space<vmem>>, vector<16x128xf32>
    tpu.vector_store %arg4[%c0_8, %c0_9], %15 {strides = array<i32>} : memref<16x128xf32, #tpu.memory_space<vmem>>, vector<16x128xf32>,
    return
  }
  func.func @transform_0(%arg0: i32) -> (i32, i32) {
    %c0_i32 = arith.constant 0 : i32
    %c0_i32_0 = arith.constant 0 : i32
    return %arg0, %c0_i32 : i32, i32
  }
  func.func @transform_1(%arg0: i32) -> (i32, i32) {
    %c0_i32 = arith.constant 0 : i32
    %c0_i32_0 = arith.constant 0 : i32
    %c0_i32_1 = arith.constant 0 : i32
    return %c0_i32, %c0_i32_0 : i32, i32
  }
  func.func @transform_2(%arg0: i32) -> (i32, i32) {
    %c0_i32 = arith.constant 0 : i32
    %c0_i32_0 = arith.constant 0 : i32
    %c0_i32_1 = arith.constant 0 : i32
    return %c0_i32, %c0_i32_0 : i32, i32
  }
  func.func @transform_3(%arg0: i32) -> (i32, i32) {
    %c0_i32 = arith.constant 0 : i32
    %c0_i32_0 = arith.constant 0 : i32
    return %arg0, %c0_i32 : i32, i32
  }
}

</mosaic_0001>

<llo_original>
// kernel: tpu_custom_call.1
$region0: #{tpu_custom_call.1}
  #allocation0 [shape = 'u32[]', space=smem, size = 0x4, offset = 0x4, fixed_abs, tag = 'smem constant byte address 0x4 - core index']
  #allocation1 [shape = 'u32[144,128]{1,0:T(1,128)}', space=vmem, size = 0x12000, scoped, tag = 'internal scratch']
  %s0 = inlined_call_operand.hbm [shape: f32[16,32], index: 0, kind: input, shape index: {}]
  %s1 = inlined_call_operand.hbm [shape: f32[32,128], index: 1, kind: input, shape index: {}]
  %s2 = inlined_call_operand.vmem [shape: f32[1,128], index: 2, kind: input, shape index: {}]
  %s3 = inlined_call_operand.hbm [shape: f32[16,128], index: 3, kind: output, shape index: {}]
  %s4 = sld [smem:[#allocation0]]
  $region30: #{tpu_custom_call.1} parent=0
    _
  %s6 = ssub.s32 1, %s4
  %s7 = scalar_select 0, %s6, %s4
  $region1: #{tpu_custom_call.1} parent=0
    #allocation2 [shape = 'u8[8192]{0}', space=vmem, size = 0x2000, scoped, tag = 'input window, operand 0, single buffered']
    #allocation3 [shape = 's32[1]{0}', space=sflag, size = 0x4, scoped, tag = 'scoped memory for tpu_custom_call.1']
    #allocation4 [shape = 's32[1]{0}', space=sflag, size = 0x4, scoped, tag = 'scoped memory for tpu_custom_call.1']
    #allocation5 [shape = 'u8[16384]{0}', space=vmem, size = 0x4000, scoped, tag = 'input window, operand 1, single buffered']
    #allocation6 [shape = 's32[1]{0}', space=sflag, size = 0x4, scoped, tag = 'scoped memory for tpu_custom_call.1']
    #allocation7 [shape = 'u8[8192]{0}', space=vmem, size = 0x2000, scoped, tag = 'output window, operand 0, single buffered']
    %8 = vsyncpa [#allocation3], 0
    %9 = vsyncpa [#allocation6], 0
    %10 = vsyncpa [#allocation4], 0
    // Predicated region
    $region2: #{tpu_custom_call.1} parent=1 // pred_check
      _
    $region3: #{tpu_custom_call.1} parent=1 // pred_check_branch
      %12 = sbr.rel (0) target = $region5
    $region4: #{tpu_custom_call.1} parent=1 // pred_region
      %s14 = ssub.s32 256, 256
      %15 = vsyncadd [#allocation3], %s14
      %s16 = sshll.u32 [#allocation2], 4
      %s17 = int_to_ptr.vmem [resolvable:$true] %s16
      %22 = dma.hbm_to_vmem [thread:$0]  %s0, 256, %s17, [#allocation3], 128, 128, 8
    $region5: #{tpu_custom_call.1} parent=1 // pred_fallthru
      _
    // Predicated region
    $region6: #{tpu_custom_call.1} parent=1 // pred_check
      _
    $region7: #{tpu_custom_call.1} parent=1 // pred_check_branch
      %24 = sbr.rel (0) target = $region9
    $region8: #{tpu_custom_call.1} parent=1 // pred_region
      %s26 = ssub.s32 512, 512
      %27 = vsyncadd [#allocation6], %s26
      %s28 = sshll.u32 [#allocation5], 4
      %s29 = int_to_ptr.vmem [resolvable:$true] %s28
      %34 = dma.hbm_to_vmem [thread:$0]  %s1, 512, %s29, [#allocation6], 128, 128, 8
    $region9: #{tpu_custom_call.1} parent=1 // pred_fallthru
      _
    // Predicated region
    $region10: #{tpu_custom_call.1} parent=1 // pred_check
      _
    $region11: #{tpu_custom_call.1} parent=1 // pred_check_branch
      %36 = sbr.rel (0) target = $region13
    $region12: #{tpu_custom_call.1} parent=1 // pred_region
      _
    $region13: #{tpu_custom_call.1} parent=1 // pred_fallthru
      _
    // Predicated region
    $region14: #{tpu_custom_call.1} parent=1 // pred_check
      _
    $region15: #{tpu_custom_call.1} parent=1 // pred_check_branch
      %38 = sbr.rel (0) target = $region17
    $region16: #{tpu_custom_call.1} parent=1 // pred_region
      %39 = dma.done [#allocation3], 256
    $region17: #{tpu_custom_call.1} parent=1 // pred_fallthru
      _
    // Predicated region
    $region18: #{tpu_custom_call.1} parent=1 // pred_check
      _
    $region19: #{tpu_custom_call.1} parent=1 // pred_check_branch
      %41 = sbr.rel (0) target = $region21
    $region20: #{tpu_custom_call.1} parent=1 // pred_region
      %42 = dma.done [#allocation6], 512
    $region21: #{tpu_custom_call.1} parent=1 // pred_fallthru
      _
    %v43 = vld [vmem:[#allocation2] sm:$0xff]
    %v44 = vld [vmem:[#allocation2 + $0x8] sm:$0xff]
    %v45 = vld [vmem:[#allocation5] sm:$0xff]
    %v46 = vld [vmem:[#allocation5 + $0x8] sm:$0xff]
    %v47 = vld [vmem:[#allocation5 + $0x10] sm:$0xff]
    %v48 = vld [vmem:[#allocation5 + $0x18] sm:$0xff]
    %vm49 = vcmask 261120
    %v51 = vsel %vm49, %v43, 0
    %v54 = vsel %vm49, %v44, 0
    %56 = vmatprep.subr.mxu0 0.0
    %57 = vmatpush1.msra.mxu0 %v45
    %58 = vmatprep.subr.mxu0 0.0
    %59 = vmatpush1.msra.mxu0 %v46
    %60 = vmatprep.subr.mxu0 0.0
    %61 = vmatpush1.msra.mxu0 %v47
    %62 = vmatprep.subr.mxu0 0.0
    %63 = vmatpush1.msra.mxu0 %v48
    %64 = vmatprep.subr.mxu0 0.0
    %65 = vmatpush1.msra.mxu0 0.0
    %66 = vmatprep.subr.mxu0 0.0
    %67 = vmatpush1.msra.mxu0 0.0
    %68 = vmatprep.subr.mxu0 0.0
    %69 = vmatpush1.msra.mxu0 0.0
    %70 = vmatprep.subr.mxu0 0.0
    %71 = vmatpush1.msra.mxu0 0.0
    %72 = vmatprep.subr.mxu0 0.0
    %73 = vmatpush1.msra.mxu0 0.0
    %74 = vmatprep.subr.mxu0 0.0
    %75 = vmatpush1.msra.mxu0 0.0
    %76 = vmatprep.subr.mxu0 0.0
    %77 = vmatpush1.msra.mxu0 0.0
    %78 = vmatprep.subr.mxu0 0.0
    %79 = vmatpush1.msra.mxu0 0.0
    %80 = vmatprep.subr.mxu0 0.0
    %81 = vmatpush1.msra.mxu0 0.0
    %82 = vmatprep.subr.mxu0 0.0
    %83 = vmatpush1.msra.mxu0 0.0
    %84 = vmatprep.subr.mxu0 0.0
    %85 = vmatpush1.msra.mxu0 0.0
    %86 = vmatprep.subr.mxu0 0.0
    %87 = vmatpush1.msra.mxu0 0.0
    %88 = vmatprep.subr.mxu0 0.0
    %89 = vmatpush1.msra.mxu0 0.0
    %90 = vmatprep.subr.mxu0 0.0
    %91 = vmatpush1.msra.mxu0 0.0
    %92 = vmatprep.subr.mxu0 0.0
    %93 = vmatpush1.msra.mxu0 0.0
    %94 = vmatprep.subr.mxu0 0.0
    %95 = vmatpush1.msra.mxu0 0.0
    %96 = vmatprep.subr.mxu0 0.0
    %97 = vmatpush1.msra.mxu0 0.0
    %98 = vmatprep.subr.mxu0 0.0
    %99 = vmatpush1.msra.mxu0 0.0
    %100 = vmatprep.subr.mxu0 0.0
    %101 = vmatpush1.msra.mxu0 0.0
    %102 = vmatprep.subr.mxu0 0.0
    %103 = vmatpush1.msra.mxu0 0.0
    %104 = vmatprep.subr.mxu0 0.0
    %105 = vmatpush1.msra.mxu0 0.0
    %106 = vmatprep.subr.mxu0 0.0
    %107 = vmatpush1.msra.mxu0 0.0
    %108 = vmatprep.subr.mxu0 0.0
    %109 = vmatpush1.msra.mxu0 0.0
    %110 = vmatprep.subr.mxu0 0.0
    %111 = vmatpush1.msra.mxu0 0.0
    %112 = vmatprep.subr.mxu0 0.0
    %113 = vmatpush1.msra.mxu0 0.0
    %114 = vmatprep.subr.mxu0 0.0
    %115 = vmatpush1.msra.mxu0 0.0
    %116 = vmatprep.subr.mxu0 0.0
    %117 = vmatpush1.msra.mxu0 0.0
    %118 = vmatprep.subr.mxu0 0.0
    %119 = vmatpush1.msra.mxu0 0.0
    %120 = vmatprep.mubr.f32.mxu0 0.0
    %121 = vmatmul.mubr.f32.gmra.mrb[0].mxu0 %v51
    %v122 = vpop.f32.mrb[0].mxu0
    %v123 = vadd.f32 0.0, %v122
    %v124 = vpop.f32.mrb[0].mxu0
    %125 = vmatprep.mubr.f32.mxu0 0.0
    %126 = vmatmul.mubr.f32.gmra.mrb[0].mxu0 %v54
    %v127 = vpop.f32.mrb[0].mxu0
    %v128 = vadd.f32 0.0, %v127
    %v129 = vpop.f32.mrb[0].mxu0
    %130 = vdwg.mxu0
    %v131 = vmul.f32 %v43, %v43
    %v132 = vmul.f32 %v44, %v44
    %v133 = vsel %vm49, %v131, 0.0
    %134 = vadd.xlane.f32.xlu0 %v133
    %v135 = vpop.xlane.xlu0 %134
    %v136 = vsel %vm49, %v132, 0.0
    %137 = vadd.xlane.f32.xlu0 %v136
    %v138 = vpop.xlane.xlu0 %137
    %v139 = vrcp.pop 32.0
    %v140 = vmul.f32 %v135, %v139
    %v141 = vmul.f32 %v138, %v139
    %v142 = vadd.f32 %v140, 1e-06
    %v143 = vadd.f32 %v141, 1e-06
    %v144 = vrsqrt.pop %v142
    %v145 = vrsqrt.pop %v143
    %v146 = vmul.f32 %v123, %v144
    %v147 = vmul.f32 %v128, %v145
    %v148 = vld [vmem:[%s2] sm:$0x1]
    %v150 = vlaneseq
    %v151 = vshrl.u32 %v150, 7
    %v152 = vsub.s32 0, %v151
    %v153 = vrot.slane %v148, %v152
    %v155 = vadd.f32 %v146, %v153
    %v156 = vadd.f32 %v147, %v153
    %157 = vst [vmem:[#allocation7] sm:$0xff] %v155
    %158 = vst [vmem:[#allocation7 + $0x8] sm:$0xff] %v156
    // Predicated region
    $region22: #{tpu_custom_call.1} parent=1 // pred_check
      _
    $region23: #{tpu_custom_call.1} parent=1 // pred_check_branch
      %160 = sbr.rel (0) target = $region25
    $region24: #{tpu_custom_call.1} parent=1 // pred_region
      %s162 = ssub.s32 256, 256
      %163 = vsyncadd [#allocation4], %s162
      %s164 = sshll.u32 [#allocation7], 4
      %s165 = int_to_ptr.vmem [resolvable:$true] %s164
      %170 = dma.vmem_to_hbm [thread:$0]  %s165, 256, %s3, [#allocation4], 128, 128, 8
    $region25: #{tpu_custom_call.1} parent=1 // pred_fallthru
      _
    // Predicated region
    $region26: #{tpu_custom_call.1} parent=1 // pred_check
      _
    $region27: #{tpu_custom_call.1} parent=1 // pred_check_branch
      %172 = sbr.rel (0) target = $region29
    $region28: #{tpu_custom_call.1} parent=1 // pred_region
      %173 = dma.done [#allocation4], 256
    $region29: #{tpu_custom_call.1} parent=1 // pred_fallthru
      _
    %174 = vsyncpa [#allocation3], 1
    %175 = vsyncpa [#allocation6], 1
    %176 = vsyncpa [#allocation4], 1

// kernel: tpu_custom_call.1
$region0: #{tpu_custom_call.1}
  #allocation0 [shape = 'u32[]', space=smem, size = 0x4, offset = 0x4, fixed_abs, tag = 'smem constant byte address 0x4 - core index']
  #allocation1 [shape = 'u32[144,128]{1,0:T(1,128)}', space=vmem, size = 0x12000, scoped, tag = 'internal scratch']
  %s0 = inlined_call_operand.hbm [shape: f32[16,32], index: 0, kind: input, shape index: {}]
  %s1 = inlined_call_operand.hbm [shape: f32[32,128], index: 1, kind: input, shape index: {}]
  %s2 = inlined_call_operand.vmem [shape: f32[1,128], index: 2, kind: input, shape index: {}]
  %s3 = inlined_call_operand.hbm [shape: f32[16,128], index: 3, kind: output, shape index: {}]
  %s4 = sld [smem:[#allocation0]]
  $region30: #{tpu_custom_call.1} parent=0
    _
  %s6 = ssub.s32 1, %s4
  %s7 = scalar_select 0, %s6, %s4
  $region1: #{tpu_custom_call.1} parent=0
    #allocation2 [shape = 'u8[8192]{0}', space=vmem, size = 0x2000, scoped, tag = 'input window, operand 0, single buffered']
    #allocation3 [shape = 's32[1]{0}', space=sflag, size = 0x4, scoped, tag = 'scoped memory for tpu_custom_call.1']
    #allocation4 [shape = 's32[1]{0}', space=sflag, size = 0x4, scoped, tag = 'scoped memory for tpu_custom_call.1']
    #allocation5 [shape = 'u8[16384]{0}', space=vmem, size = 0x4000, scoped, tag = 'input window, operand 1, single buffered']
    #allocation6 [shape = 's32[1]{0}', space=sflag, size = 0x4, scoped, tag = 'scoped memory for tpu_custom_call.1']
    #allocation7 [shape = 'u8[8192]{0}', space=vmem, size = 0x2000, scoped, tag = 'output window, operand 0, single buffered']
    %8 = vsyncpa [#allocation3], 0
    %9 = vsyncpa [#allocation6], 0
    %10 = vsyncpa [#allocation4], 0
    // Predicated region
    $region2: #{tpu_custom_call.1} parent=1 // pred_check
      _
    $region3: #{tpu_custom_call.1} parent=1 // pred_check_branch
      %12 = sbr.rel (0) target = $region5
    $region4: #{tpu_custom_call.1} parent=1 // pred_region
      %s14 = ssub.s32 256, 256
      %15 = vsyncadd [#allocation3], %s14
      %s16 = sshll.u32 [#allocation2], 4
      %s17 = int_to_ptr.vmem [resolvable:$true] %s16
      %22 = dma.hbm_to_vmem [thread:$0]  %s0, 256, %s17, [#allocation3], 128, 128, 8
    $region5: #{tpu_custom_call.1} parent=1 // pred_fallthru
      _
    // Predicated region
    $region6: #{tpu_custom_call.1} parent=1 // pred_check
      _
    $region7: #{tpu_custom_call.1} parent=1 // pred_check_branch
      %24 = sbr.rel (0) target = $region9
    $region8: #{tpu_custom_call.1} parent=1 // pred_region
      %s26 = ssub.s32 512, 512
      %27 = vsyncadd [#allocation6], %s26
      %s28 = sshll.u32 [#allocation5], 4
      %s29 = int_to_ptr.vmem [resolvable:$true] %s28
      %34 = dma.hbm_to_vmem [thread:$0]  %s1, 512, %s29, [#allocation6], 128, 128, 8
    $region9: #{tpu_custom_call.1} parent=1 // pred_fallthru
      _
    // Predicated region
    $region10: #{tpu_custom_call.1} parent=1 // pred_check
      _
    $region11: #{tpu_custom_call.1} parent=1 // pred_check_branch
      %36 = sbr.rel (0) target = $region13
    $region12: #{tpu_custom_call.1} parent=1 // pred_region
      _
    $region13: #{tpu_custom_call.1} parent=1 // pred_fallthru
      _
    // Predicated region
    $region14: #{tpu_custom_call.1} parent=1 // pred_check
      _
    $region15: #{tpu_custom_call.1} parent=1 // pred_check_branch
      %38 = sbr.rel (0) target = $region17
    $region16: #{tpu_custom_call.1} parent=1 // pred_region
      %39 = dma.done [#allocation3], 256
    $region17: #{tpu_custom_call.1} parent=1 // pred_fallthru
      _
    // Predicated region
    $region18: #{tpu_custom_call.1} parent=1 // pred_check
      _
    $region19: #{tpu_custom_call.1} parent=1 // pred_check_branch
      %41 = sbr.rel (0) target = $region21
    $region20: #{tpu_custom_call.1} parent=1 // pred_region
      %42 = dma.done [#allocation6], 512
    $region21: #{tpu_custom_call.1} parent=1 // pred_fallthru
      _
    %v43 = vld [vmem:[#allocation2] sm:$0xff]
    %v44 = vld [vmem:[#allocation2 + $0x8] sm:$0xff]
    %v45 = vld [vmem:[#allocation5] sm:$0xff]
    %v46 = vld [vmem:[#allocation5 + $0x8] sm:$0xff]
    %v47 = vld [vmem:[#allocation5 + $0x10] sm:$0xff]
    %v48 = vld [vmem:[#allocation5 + $0x18] sm:$0xff]
    %vm49 = vcmask 261120
    %v51 = vsel %vm49, %v43, 0
    %v54 = vsel %vm49, %v44, 0
    %56 = vmatprep.subr.mxu0 0.0
    %57 = vmatpush1.msra.mxu0 %v45
    %58 = vmatprep.subr.mxu0 0.0
    %59 = vmatpush1.msra.mxu0 %v46
    %60 = vmatprep.subr.mxu0 0.0
    %61 = vmatpush1.msra.mxu0 %v47
    %62 = vmatprep.subr.mxu0 0.0
    %63 = vmatpush1.msra.mxu0 %v48
    %64 = vmatprep.subr.mxu0 0.0
    %65 = vmatpush1.msra.mxu0 0.0
    %66 = vmatprep.subr.mxu0 0.0
    %67 = vmatpush1.msra.mxu0 0.0
    %68 = vmatprep.subr.mxu0 0.0
    %69 = vmatpush1.msra.mxu0 0.0
    %70 = vmatprep.subr.mxu0 0.0
    %71 = vmatpush1.msra.mxu0 0.0
    %72 = vmatprep.subr.mxu0 0.0
    %73 = vmatpush1.msra.mxu0 0.0
    %74 = vmatprep.subr.mxu0 0.0
    %75 = vmatpush1.msra.mxu0 0.0
    %76 = vmatprep.subr.mxu0 0.0
    %77 = vmatpush1.msra.mxu0 0.0
    %78 = vmatprep.subr.mxu0 0.0
    %79 = vmatpush1.msra.mxu0 0.0
    %80 = vmatprep.subr.mxu0 0.0
    %81 = vmatpush1.msra.mxu0 0.0
    %82 = vmatprep.subr.mxu0 0.0
    %83 = vmatpush1.msra.mxu0 0.0
    %84 = vmatprep.subr.mxu0 0.0
    %85 = vmatpush1.msra.mxu0 0.0
    %86 = vmatprep.subr.mxu0 0.0
    %87 = vmatpush1.msra.mxu0 0.0
    %88 = vmatprep.subr.mxu0 0.0
    %89 = vmatpush1.msra.mxu0 0.0
    %90 = vmatprep.subr.mxu0 0.0
    %91 = vmatpush1.msra.mxu0 0.0
    %92 = vmatprep.subr.mxu0 0.0
    %93 = vmatpush1.msra.mxu0 0.0
    %94 = vmatprep.subr.mxu0 0.0
    %95 = vmatpush1.msra.mxu0 0.0
    %96 = vmatprep.subr.mxu0 0.0
    %97 = vmatpush1.msra.mxu0 0.0
    %98 = vmatprep.subr.mxu0 0.0
    %99 = vmatpush1.msra.mxu0 0.0
    %100 = vmatprep.subr.mxu0 0.0
    %101 = vmatpush1.msra.mxu0 0.0
    %102 = vmatprep.subr.mxu0 0.0
    %103 = vmatpush1.msra.mxu0 0.0
    %104 = vmatprep.subr.mxu0 0.0
    %105 = vmatpush1.msra.mxu0 0.0
    %106 = vmatprep.subr.mxu0 0.0
    %107 = vmatpush1.msra.mxu0 0.0
    %108 = vmatprep.subr.mxu0 0.0
    %109 = vmatpush1.msra.mxu0 0.0
    %110 = vmatprep.subr.mxu0 0.0
    %111 = vmatpush1.msra.mxu0 0.0
    %112 = vmatprep.subr.mxu0 0.0
    %113 = vmatpush1.msra.mxu0 0.0
    %114 = vmatprep.subr.mxu0 0.0
    %115 = vmatpush1.msra.mxu0 0.0
    %116 = vmatprep.subr.mxu0 0.0
    %117 = vmatpush1.msra.mxu0 0.0
    %118 = vmatprep.subr.mxu0 0.0
    %119 = vmatpush1.msra.mxu0 0.0
    %120 = vmatprep.mubr.f32.mxu0 0.0
    %121 = vmatmul.mubr.f32.gmra.mrb[0].mxu0 %v51
    %v122 = vpop.f32.mrb[0].mxu0
    %v123 = vadd.f32 0.0, %v122
    %v124 = vpop.f32.mrb[0].mxu0
    %125 = vmatprep.mubr.f32.mxu0 0.0
    %126 = vmatmul.mubr.f32.gmra.mrb[0].mxu0 %v54
    %v127 = vpop.f32.mrb[0].mxu0
    %v128 = vadd.f32 0.0, %v127
    %v129 = vpop.f32.mrb[0].mxu0
    %130 = vdwg.mxu0
    %v131 = vmul.f32 %v43, %v43
    %v132 = vmul.f32 %v44, %v44
    %v133 = vsel %vm49, %v131, 0.0
    %134 = vadd.xlane.f32.xlu0 %v133
    %v135 = vpop.xlane.xlu0 %134
    %v136 = vsel %vm49, %v132, 0.0
    %137 = vadd.xlane.f32.xlu0 %v136
    %v138 = vpop.xlane.xlu0 %137
    %v139 = vrcp.pop 32.0
    %v140 = vmul.f32 %v135, %v139
    %v141 = vmul.f32 %v138, %v139
    %v142 = vadd.f32 %v140, 1e-06
    %v143 = vadd.f32 %v141, 1e-06
    %v144 = vrsqrt.pop %v142
    %v145 = vrsqrt.pop %v143
    %v146 = vmul.f32 %v123, %v144
    %v147 = vmul.f32 %v128, %v145
    %v148 = vld [vmem:[%s2] sm:$0x1]
    %v150 = vlaneseq
    %v151 = vshrl.u32 %v150, 7
    %v152 = vsub.s32 0, %v151
    %v153 = vrot.slane %v148, %v152
    %v155 = vadd.f32 %v146, %v153
    %v156 = vadd.f32 %v147, %v153
    %157 = vst [vmem:[#allocation7] sm:$0xff] %v155
    %158 = vst [vmem:[#allocation7 + $0x8] sm:$0xff] %v156
    // Predicated region
    $region22: #{tpu_custom_call.1} parent=1 // pred_check
      _
    $region23: #{tpu_custom_call.1} parent=1 // pred_check_branch
      %160 = sbr.rel (0) target = $region25
    $region24: #{tpu_custom_call.1} parent=1 // pred_region
      %s162 = ssub.s32 256, 256
      %163 = vsyncadd [#allocation4], %s162
      %s164 = sshll.u32 [#allocation7], 4
      %s165 = int_to_ptr.vmem [resolvable:$true] %s164
      %170 = dma.vmem_to_hbm [thread:$0]  %s165, 256, %s3, [#allocation4], 128, 128, 8
    $region25: #{tpu_custom_call.1} parent=1 // pred_fallthru
      _
    // Predicated region
    $region26: #{tpu_custom_call.1} parent=1 // pred_check
      _
    $region27: #{tpu_custom_call.1} parent=1 // pred_check_branch
      %172 = sbr.rel (0) target = $region29
    $region28: #{tpu_custom_call.1} parent=1 // pred_region
      %173 = dma.done [#allocation4], 256
    $region29: #{tpu_custom_call.1} parent=1 // pred_fallthru
      _
    %174 = vsyncpa [#allocation3], 1
    %175 = vsyncpa [#allocation6], 1
    %176 = vsyncpa [#allocation4], 1

</llo_original>
